<compile_context>
chip_gen: v5e
topology: v5e:2x2
jax: 0.10.0
libtpu: 0.0.40
codegen_flags: <defaults>
</compile_context>

<pallas_src>
import functools

import jax
import jax.numpy as jnp
from jax.experimental import pallas as pl
from jax.experimental.pallas import tpu as pltpu


def _attention2d_kernel(x_ref, w1_ref, b1_ref, w2_ref, b2_ref, out_ref,
                        acc_ref, *, inv_hw):
    """One grid step: accumulate the spatial sum; fused epilogue on last tile.

    x_ref  : (tn, C, tl)  input block (flattened spatial axis last, lane-dense)
    w1_ref : (C, K)       fc1 weight (in x out)
    b1_ref : (1, K)
    w2_ref : (K, K)       fc2 weight (in x out)
    b2_ref : (1, K)
    out_ref: (tn, K)      softmax attention weights
    acc_ref: (tn, C) f32  running spatial sum (persists across the L grid axis)
    """
    l = pl.program_id(1)

    @pl.when(l == 0)
    def _():
        acc_ref[...] = jnp.zeros_like(acc_ref)

    # Partial sum over this spatial tile; only this tile is upcast to f32.
    acc_ref[...] += jnp.sum(x_ref[...].astype(jnp.float32), axis=-1)

    @pl.when(l == pl.num_programs(1) - 1)
    def _():
        pooled = acc_ref[...] * inv_hw                            # (tn, C) mean
        z1 = jnp.dot(pooled, w1_ref[...].astype(jnp.float32),
                     preferred_element_type=jnp.float32)
        z1 = jnp.maximum(z1 + b1_ref[...].astype(jnp.float32), 0.0)
        z2 = jnp.dot(z1, w2_ref[...].astype(jnp.float32),
                     preferred_element_type=jnp.float32)
        z2 = z2 + b2_ref[...].astype(jnp.float32)
        # numerically-stable softmax over the K axis
        m = jnp.max(z2, axis=-1, keepdims=True)
        e = jnp.exp(z2 - m)
        out_ref[...] = (e / jnp.sum(e, axis=-1, keepdims=True)).astype(out_ref.dtype)


def _largest_divisor_leq(n, cap):
    for c in range(min(n, cap), 0, -1):
        if n % c == 0:
            return c
    return 1


def attention2d_forward(x_nchw, w1, b1, w2, b2, *, l_tile_budget_bytes=4 << 20):
    """attention2d.forward.

    x_nchw : (N, C, H, W)
    w1     : (K, C, 1, 1) torch Conv2d(in_planes, K, 1) weight;  b1: (K,)
    w2     : (K, K, 1, 1) torch Conv2d(K, K, 1) weight;          b2: (K,)
    returns: (N, K) softmax attention weights
    """
    N, C, H, W = x_nchw.shape
    Kdim = w1.shape[0]
    L = H * W

    x = x_nchw.reshape(N, C, L)                    # free reshape (NCHW contiguous)
    w1_t = jnp.transpose(w1.reshape(Kdim, C))      # (C, K)   in x out
    w2_t = jnp.transpose(w2.reshape(Kdim, Kdim))   # (K, K)   in x out

    # ---- tile selection ----------------------------------------------------
    tn = _largest_divisor_leq(N, 8)                # batch tile (parallel axis)
    itemsize = x.dtype.itemsize
    if L <= 128:
        tl = L                                     # full minor dim is allowed
    else:
        bytes_per_l = max(1, tn * C * itemsize)
        tl = max(128, min(L, l_tile_budget_bytes // bytes_per_l))
        tl = max(128, (tl // 128) * 128)           # lane-dense multiple of 128
    # Pad the spatial axis with zeros so tl divides it (zeros don't change the
    # sum; the mean divides by the true H*W).
    Lp = ((L + tl - 1) // tl) * tl
    if Lp != L:
        x = jnp.pad(x, ((0, 0), (0, 0), (0, Lp - L)))

    grid = (N // tn, Lp // tl)

    # Scoped VMEM: double-buffered x tile + tiny weights/epilogue, with headroom.
    x_tile_bytes = tn * C * tl * itemsize
    vmem_bytes = int(min(32 << 20, max(4 << 20, 4 * x_tile_bytes + (1 << 20))))

    kernel = functools.partial(_attention2d_kernel, inv_hw=1.0 / float(L))

    return pl.pallas_call(
        kernel,
        out_shape=jax.ShapeDtypeStruct((N, Kdim), x_nchw.dtype),
        grid_spec=pltpu.PrefetchScalarGridSpec(
            num_scalar_prefetch=0,
            grid=grid,
            in_specs=[
                pl.BlockSpec((tn, C, tl), lambda n, l: (n, 0, l)),
                pl.BlockSpec((C, Kdim), lambda n, l: (0, 0)),
                pl.BlockSpec((1, Kdim), lambda n, l: (0, 0)),
                pl.BlockSpec((Kdim, Kdim), lambda n, l: (0, 0)),
                pl.BlockSpec((1, Kdim), lambda n, l: (0, 0)),
            ],
            out_specs=pl.BlockSpec((tn, Kdim), lambda n, l: (n, 0)),
            scratch_shapes=[pltpu.VMEM((tn, C), jnp.float32)],
        ),
        compiler_params=pltpu.CompilerParams(
            dimension_semantics=("parallel", "arbitrary"),
            vmem_limit_bytes=vmem_bytes,
        ),
    )(x, w1_t, b1.reshape(1, Kdim), w2_t, b2.reshape(1, Kdim))


# ----------------------- pure-JAX reference (for checking) -----------------------
def _ref_attention2d(x, w1, b1, w2, b2):
    Kdim = w1.shape[0]
    C = x.shape[1]
    pooled = jnp.mean(x, axis=(2, 3))                              # (N, C)
    z1 = jax.nn.relu(pooled @ w1.reshape(Kdim, C).T + b1)          # (N, K)
    z2 = z1 @ w2.reshape(Kdim, Kdim).T + b2                        # (N, K)
    return jax.nn.softmax(z2, axis=1)


if __name__ == "__main__":
    key = jax.random.PRNGKey(0)
    N, C, H, W = 2, 4, 16, 16
    Kexp = 3  # number of experts / attention branches

    ks = jax.random.split(key, 5)
    x = jax.random.normal(ks[0], (N, C, H, W), dtype=jnp.float32)

    # PyTorch Conv2d default init: U(-1/sqrt(fan_in), 1/sqrt(fan_in))
    b1_bound = 1.0 / (C ** 0.5)
    w1 = jax.random.uniform(ks[1], (Kexp, C, 1, 1), jnp.float32, -b1_bound, b1_bound)
    b1 = jax.random.uniform(ks[2], (Kexp,), jnp.float32, -b1_bound, b1_bound)
    b2_bound = 1.0 / (Kexp ** 0.5)
    w2 = jax.random.uniform(ks[3], (Kexp, Kexp, 1, 1), jnp.float32, -b2_bound, b2_bound)
    b2 = jax.random.uniform(ks[4], (Kexp,), jnp.float32, -b2_bound, b2_bound)

    ref = _ref_attention2d(x, w1, b1, w2, b2)

    # 1) default tiling (single spatial tile at this toy size)
    out = attention2d_forward(x, w1, b1, w2, b2)
    out = jax.block_until_ready(out)
    assert out.shape == (N, Kexp)
    assert jnp.allclose(out, ref, atol=1e-5, rtol=1e-5), "mismatch vs reference"

    # 2) force a small spatial tile so the multi-step reduction path
    #    (accumulator init / accumulate / fused epilogue) is exercised too.
    out2 = attention2d_forward(x, w1, b1, w2, b2, l_tile_budget_bytes=1 << 10)
    out2 = jax.block_until_ready(out2)
    assert jnp.allclose(out2, ref, atol=1e-5, rtol=1e-5), "mismatch vs reference (tiled)"
    assert jnp.allclose(jnp.sum(out, axis=1), 1.0, atol=1e-5)

    print("KERNEL_OK")
</pallas_src>

<mosaic_0001>
module attributes {stable_mosaic.version = 11 : i64} {
  func.func @_attention2d_kernel(%arg0: i32, %arg1: i32, %arg2: memref<2x4x256xf32, #tpu.memory_space<vmem>>, %arg3: memref<4x3xf32, #tpu.memory_space<vmem>>, %arg4: memref<1x3xf32, #tpu.memory_space<vmem>>, %arg5: memref<3x3xf32, #tpu.memory_space<vmem>>, %arg6: memref<1x3xf32, #tpu.memory_space<vmem>>, %arg7: memref<2x3xf32, #tpu.memory_space<vmem>>, %arg8: memref<2x4xf32, #tpu.memory_space<vmem>>) attributes {dimension_semantics = [#tpu.dimension_semantics<parallel>, #tpu.dimension_semantics<arbitrary>], iteration_bounds = array<i64: 1, 1>, scalar_prefetch = 0 : i64, scratch_operands = 1 : i64, tpu.core_type = #tpu.core_type<tc>, window_params = [{transform_indices = @transform_0, window_bounds = array<i64: 2, 4, 256>}, {pipeline_mode = #tpu.pipeline_mode<synchronous>, transform_indices = @transform_1, window_bounds = array<i64: 4, 3>}, {pipeline_mode = #tpu.pipeline_mode<synchronous>, transform_indices = @transform_2, window_bounds = array<i64: 1, 3>}, {pipeline_mode = #tpu.pipeline_mode<synchronous>, transform_indices = @transform_3, window_bounds = array<i64: 3, 3>}, {pipeline_mode = #tpu.pipeline_mode<synchronous>, transform_indices = @transform_4, window_bounds = array<i64: 1, 3>}, {transform_indices = @transform_5, window_bounds = array<i64: 2, 3>}]} {
    %c0_i32 = arith.constant 0 : i32
    %0 = arith.cmpi eq, %arg1, %c0_i32 : i32
    %1 = arith.extui %0 : i1 to i32
    %c0_i32_0 = arith.constant 0 : i32
    %2 = arith.cmpi ne, %1, %c0_i32_0 : i32
    scf.if %2 {
      %cst_9 = arith.constant 0.000000e+00 : f32
      %11 = vector.broadcast %cst_9 : f32 to vector<2x4xf32>
      %c0_10 = arith.constant 0 : index
      %c0_11 = arith.constant 0 : index
      %12 = vector.load %arg8[%c0_10, %c0_11] : memref<2x4xf32, #tpu.memory_space<vmem>>, vector<2x4xf32>
      tpu.vector_store %arg8[%c0_10, %c0_11], %11 {strides = array<i32>} : memref<2x4xf32, #tpu.memory_space<vmem>>, vector<2x4xf32>,
    } else {
    }
    %c0 = arith.constant 0 : index
    %c0_1 = arith.constant 0 : index
    %3 = vector.load %arg8[%c0, %c0_1] : memref<2x4xf32, #tpu.memory_space<vmem>>, vector<2x4xf32>
    %c0_2 = arith.constant 0 : index
    %c0_3 = arith.constant 0 : index
    %c0_4 = arith.constant 0 : index
    %4 = vector.load %arg2[%c0_2, %c0_3, %c0_4] : memref<2x4x256xf32, #tpu.memory_space<vmem>>, vector<2x4x256xf32>
    %cst = arith.constant dense<0.000000e+00> : vector<2x4xf32>
    %5 = vector.multi_reduction <add>, %4, %cst [2] : vector<2x4x256xf32> to vector<2x4xf32>
    %6 = arith.addf %3, %5 : vector<2x4xf32>
    %c0_5 = arith.constant 0 : index
    %c0_6 = arith.constant 0 : index
    %7 = vector.load %arg8[%c0_5, %c0_6] : memref<2x4xf32, #tpu.memory_space<vmem>>, vector<2x4xf32>
    tpu.vector_store %arg8[%c0_5, %c0_6], %6 {strides = array<i32>} : memref<2x4xf32, #tpu.memory_space<vmem>>, vector<2x4xf32>,
    %c0_i32_7 = arith.constant 0 : i32
    %8 = arith.cmpi eq, %arg1, %c0_i32_7 : i32
    %9 = arith.extui %8 : i1 to i32
    %c0_i32_8 = arith.constant 0 : i32
    %10 = arith.cmpi ne, %9, %c0_i32_8 : i32
    scf.if %10 {
      %c0_9 = arith.constant 0 : index
      %c0_10 = arith.constant 0 : index
      %11 = vector.load %arg8[%c0_9, %c0_10] : memref<2x4xf32, #tpu.memory_space<vmem>>, vector<2x4xf32>
      %cst_11 = arith.constant 3.906250e-03 : f32
      %12 = vector.broadcast %cst_11 : f32 to vector<2x4xf32>
      %13 = arith.mulf %11, %12 : vector<2x4xf32>
      %c0_12 = arith.constant 0 : index
      %c0_13 = arith.constant 0 : index
      %14 = vector.load %arg3[%c0_12, %c0_13] : memref<4x3xf32, #tpu.memory_space<vmem>>, vector<4x3xf32>
      %cst_14 = arith.constant dense<0.000000e+00> : vector<2x3xf32>
      %15 = tpu.matmul %13, %14, %cst_14 {dimension_numbers = #tpu.dot_dimension_numbers<[1], [0], [0], [1], [0, 0, 1, 1], [], []>} : vector<2x4xf32>, vector<4x3xf32>, vector<2x3xf32> -> vector<2x3xf32>
      %c0_15 = arith.constant 0 : index
      %c0_16 = arith.constant 0 : index
      %16 = vector.load %arg4[%c0_15, %c0_16] : memref<1x3xf32, #tpu.memory_space<vmem>>, vector<1x3xf32>
      %17 = vector.broadcast %16 : vector<1x3xf32> to vector<2x3xf32>
      %18 = arith.addf %15, %17 : vector<2x3xf32>
      %cst_17 = arith.constant 0.000000e+00 : f32
      %19 = vector.broadcast %cst_17 : f32 to vector<2x3xf32>
      %20 = arith.maximumf %18, %19 : vector<2x3xf32>
      %c0_18 = arith.constant 0 : index
      %c0_19 = arith.constant 0 : index
      %21 = vector.load %arg5[%c0_18, %c0_19] : memref<3x3xf32, #tpu.memory_space<vmem>>, vector<3x3xf32>
      %cst_20 = arith.constant dense<0.000000e+00> : vector<2x3xf32>
      %22 = tpu.matmul %20, %21, %cst_20 {dimension_numbers = #tpu.dot_dimension_numbers<[1], [0], [0], [1], [0, 0, 1, 1], [], []>} : vector<2x3xf32>, vector<3x3xf32>, vector<2x3xf32> -> vector<2x3xf32>
      %c0_21 = arith.constant 0 : index
      %c0_22 = arith.constant 0 : index
      %23 = vector.load %arg6[%c0_21, %c0_22] : memref<1x3xf32, #tpu.memory_space<vmem>>, vector<1x3xf32>
      %24 = vector.broadcast %23 : vector<1x3xf32> to vector<2x3xf32>
      %25 = arith.addf %22, %24 : vector<2x3xf32>
      %cst_23 = arith.constant dense<0xFF800000> : vector<2xf32>
      %26 = vector.multi_reduction <maximumf>, %25, %cst_23 [1] : vector<2x3xf32> to vector<2xf32>
      %27 = vector.shape_cast %26 : vector<2xf32> to vector<2x1xf32>
      %28 = vector.broadcast %27 : vector<2x1xf32> to vector<2x3xf32>
      %29 = arith.subf %25, %28 : vector<2x3xf32>
      %30 = math.exp %29 : vector<2x3xf32>
      %cst_24 = arith.constant dense<0.000000e+00> : vector<2xf32>
      %31 = vector.multi_reduction <add>, %30, %cst_24 [1] : vector<2x3xf32> to vector<2xf32>
      %32 = vector.shape_cast %31 : vector<2xf32> to vector<2x1xf32>
      %33 = vector.broadcast %32 : vector<2x1xf32> to vector<2x3xf32>
      %34 = arith.divf %30, %33 : vector<2x3xf32>
      %c0_25 = arith.constant 0 : index
      %c0_26 = arith.constant 0 : index
      %35 = vector.load %arg7[%c0_25, %c0_26] : memref<2x3xf32, #tpu.memory_space<vmem>>, vector<2x3xf32>
      tpu.vector_store %arg7[%c0_25, %c0_26], %34 {strides = array<i32>} : memref<2x3xf32, #tpu.memory_space<vmem>>, vector<2x3xf32>,
    } else {
    }
    return
  }
  func.func @transform_0(%arg0: i32, %arg1: i32) -> (i32, i32, i32) {
    %c0_i32 = arith.constant 0 : i32
    %c0_i32_0 = arith.constant 0 : i32
    return %arg0, %c0_i32, %arg1 : i32, i32, i32
  }
  func.func @transform_1(%arg0: i32, %arg1: i32) -> (i32, i32) {
    %c0_i32 = arith.constant 0 : i32
    %c0_i32_0 = arith.constant 0 : i32
    %c0_i32_1 = arith.constant 0 : i32
    return %c0_i32, %c0_i32_0 : i32, i32
  }
  func.func @transform_2(%arg0: i32, %arg1: i32) -> (i32, i32) {
    %c0_i32 = arith.constant 0 : i32
    %c0_i32_0 = arith.constant 0 : i32
    %c0_i32_1 = arith.constant 0 : i32
    return %c0_i32, %c0_i32_0 : i32, i32
  }
  func.func @transform_3(%arg0: i32, %arg1: i32) -> (i32, i32) {
    %c0_i32 = arith.constant 0 : i32
    %c0_i32_0 = arith.constant 0 : i32
    %c0_i32_1 = arith.constant 0 : i32
    return %c0_i32, %c0_i32_0 : i32, i32
  }
  func.func @transform_4(%arg0: i32, %arg1: i32) -> (i32, i32) {
    %c0_i32 = arith.constant 0 : i32
    %c0_i32_0 = arith.constant 0 : i32
    %c0_i32_1 = arith.constant 0 : i32
    return %c0_i32, %c0_i32_0 : i32, i32
  }
  func.func @transform_5(%arg0: i32, %arg1: i32) -> (i32, i32) {
    %c0_i32 = arith.constant 0 : i32
    %c0_i32_0 = arith.constant 0 : i32
    return %arg0, %c0_i32 : i32, i32
  }
}

</mosaic_0001>

<llo_original>
// kernel: tpu_custom_call.1
$region0: #{tpu_custom_call.1}
  #allocation0 [shape = 'u32[]', space=smem, size = 0x4, offset = 0x4, fixed_abs, tag = 'smem constant byte address 0x4 - core index']
  #allocation1 [shape = 'u32[72,128]{1,0:T(1,128)}', space=vmem, size = 0x9000, scoped, tag = 'internal scratch']
  #allocation2 [shape = 'f32[2,4]{1,0:T(2,128)}', space=vmem, size = 0x400, scoped, tag = 'scratch operand']
  %s0 = inlined_call_operand.hbm [shape: f32[2,4,256], index: 0, kind: input, shape index: {}]
  %s1 = inlined_call_operand.hbm [shape: f32[4,3], index: 1, kind: input, shape index: {}]
  %s2 = inlined_call_operand.vmem [shape: f32[1,3], index: 2, kind: input, shape index: {}]
  %s3 = inlined_call_operand.hbm [shape: f32[3,3], index: 3, kind: input, shape index: {}]
  %s4 = inlined_call_operand.vmem [shape: f32[1,3], index: 4, kind: input, shape index: {}]
  %s5 = inlined_call_operand.hbm [shape: f32[2,3], index: 5, kind: output, shape index: {}]
  %s6 = sld [smem:[#allocation0]]
  $region50: #{tpu_custom_call.1} parent=0
    _
  %s8 = ssub.s32 1, %s6
  %s9 = scalar_select 0, %s8, %s6
  $region1: #{tpu_custom_call.1} parent=0
    #allocation3 [shape = 'u8[8192]{0}', space=vmem, size = 0x2000, scoped, tag = 'input window, operand 0, single buffered']
    #allocation4 [shape = 's32[1]{0}', space=sflag, size = 0x4, scoped, tag = 'scoped memory for tpu_custom_call.1']
    #allocation5 [shape = 's32[1]{0}', space=sflag, size = 0x4, scoped, tag = 'scoped memory for tpu_custom_call.1']
    #allocation6 [shape = 'u8[2048]{0}', space=vmem, size = 0x800, scoped, tag = 'input window, operand 1, single buffered']
    #allocation7 [shape = 's32[1]{0}', space=sflag, size = 0x4, scoped, tag = 'scoped memory for tpu_custom_call.1']
    #allocation8 [shape = 'u8[2048]{0}', space=vmem, size = 0x800, scoped, tag = 'input window, operand 3, single buffered']
    #allocation9 [shape = 'u8[1024]{0}', space=vmem, size = 0x400, scoped, tag = 'output window, operand 0, single buffered']
    %10 = vsyncpa [#allocation4], 0
    %11 = vsyncpa [#allocation7], 0
    %12 = vsyncpa [#allocation5], 0
    // Predicated region
    $region2: #{tpu_custom_call.1} parent=1 // pred_check
      _
    $region3: #{tpu_custom_call.1} parent=1 // pred_check_branch
      %14 = sbr.rel (0) target = $region5
    $region4: #{tpu_custom_call.1} parent=1 // pred_region
      %16 = vsyncadd [#allocation4], 0
      %s17 = sshll.u32 %s0, 4
      %s18 = int_to_ptr.hbm [resolvable:$true] %s17
      %s19 = sshll.u32 [#allocation3], 4
      %s20 = int_to_ptr.vmem [resolvable:$true] %s19
      %25 = dma.hbm_to_vmem [thread:$0]  %s18, 256, %s20, [#allocation4], 128, 128, 8
    $region5: #{tpu_custom_call.1} parent=1 // pred_fallthru
      _
    // Predicated region
    $region6: #{tpu_custom_call.1} parent=1 // pred_check
      _
    $region7: #{tpu_custom_call.1} parent=1 // pred_check_branch
      %27 = sbr.rel (0) target = $region9
    $region8: #{tpu_custom_call.1} parent=1 // pred_region
      %29 = vsyncadd [#allocation7], 0
      %s31 = sshll.u32 %s1, 4
      %s32 = int_to_ptr.hbm [resolvable:$true] %s31
      %s33 = sshll.u32 [#allocation6], 4
      %s34 = int_to_ptr.vmem [resolvable:$true] %s33
      %36 = dma.hbm_to_vmem [thread:$0]  %s32, 64, %s34, [#allocation7]
    $region9: #{tpu_custom_call.1} parent=1 // pred_fallthru
      _
    // Predicated region
    $region10: #{tpu_custom_call.1} parent=1 // pred_check
      _
    $region11: #{tpu_custom_call.1} parent=1 // pred_check_branch
      %38 = sbr.rel (0) target = $region13
    $region12: #{tpu_custom_call.1} parent=1 // pred_region
      _
    $region13: #{tpu_custom_call.1} parent=1 // pred_fallthru
      _
    // Predicated region
    $region14: #{tpu_custom_call.1} parent=1 // pred_check
      _
    $region15: #{tpu_custom_call.1} parent=1 // pred_check_branch
      %40 = sbr.rel (0) target = $region17
    $region16: #{tpu_custom_call.1} parent=1 // pred_region
      %42 = vsyncadd [#allocation7], 0
      %s44 = sshll.u32 %s3, 4
      %s45 = int_to_ptr.hbm [resolvable:$true] %s44
      %s46 = sshll.u32 [#allocation8], 4
      %s47 = int_to_ptr.vmem [resolvable:$true] %s46
      %49 = dma.hbm_to_vmem [thread:$0]  %s45, 64, %s47, [#allocation7]
    $region17: #{tpu_custom_call.1} parent=1 // pred_fallthru
      _
    // Predicated region
    $region18: #{tpu_custom_call.1} parent=1 // pred_check
      _
    $region19: #{tpu_custom_call.1} parent=1 // pred_check_branch
      %51 = sbr.rel (0) target = $region21
    $region20: #{tpu_custom_call.1} parent=1 // pred_region
      _
    $region21: #{tpu_custom_call.1} parent=1 // pred_fallthru
      _
    // Predicated region
    $region22: #{tpu_custom_call.1} parent=1 // pred_check
      _
    $region23: #{tpu_custom_call.1} parent=1 // pred_check_branch
      %53 = sbr.rel (0) target = $region25
    $region24: #{tpu_custom_call.1} parent=1 // pred_region
      %55 = dma.done [#allocation4], 256
    $region25: #{tpu_custom_call.1} parent=1 // pred_fallthru
      _
    // Predicated region
    $region26: #{tpu_custom_call.1} parent=1 // pred_check
      _
    $region27: #{tpu_custom_call.1} parent=1 // pred_check_branch
      %57 = sbr.rel (0) target = $region29
    $region28: #{tpu_custom_call.1} parent=1 // pred_region
      %59 = dma.done [#allocation7], 64
    $region29: #{tpu_custom_call.1} parent=1 // pred_fallthru
      _
    // Predicated region
    $region30: #{tpu_custom_call.1} parent=1 // pred_check
      _
    $region31: #{tpu_custom_call.1} parent=1 // pred_check_branch
      %61 = sbr.rel (0) target = $region33
    $region32: #{tpu_custom_call.1} parent=1 // pred_region
      %63 = dma.done [#allocation7], 64
    $region33: #{tpu_custom_call.1} parent=1 // pred_fallthru
      _
    %p64 = scmp.eq.s32.totalorder 0, 0
    // Predicated region
    $region34: #{tpu_custom_call.1} parent=1 // pred_check
      %p65 = pneg %p64
    $region35: #{tpu_custom_call.1} parent=1 // pred_check_branch
      %67 = sbr.rel (%p65) target = $region37
    $region36: #{tpu_custom_call.1} parent=1 // pred_region
      %vm68 = vcmask 25600
      %69 = vst.msk [vmem:[#allocation2] sm:$0x3] %vm68, 0.0
    $region37: #{tpu_custom_call.1} parent=1 // pred_fallthru
      _
    %v70 = vld [vmem:[#allocation2] sm:$0x3]
    %v71 = vld [vmem:[#allocation3] sm:$0xff]
    %v72 = vld [vmem:[#allocation3 + $0x8] sm:$0xff]
    %75 = vst [vmem:[#allocation1] ss:$2 sm:$0xff] %v71
    %v76 = vld.sshfl [vmem:[#allocation1] sm:$0xff pattern:$0x75316420]
    %v77 = vld.sshfl [vmem:[#allocation1 + $0x8] sm:$0xff pattern:$0x75316420]
    %s78 = scalar_lea.vmem [#allocation1], 16
    %79 = vst [vmem:[%s78] ss:$2 sm:$0xff] %v72
    %v80 = vld.sshfl [vmem:[#allocation1 + $0x10] sm:$0xff pattern:$0x75316420]
    %v81 = vld.sshfl [vmem:[#allocation1 + $0x18] sm:$0xff pattern:$0x75316420]
    %vm86 = vcmask 1043456
    %v87 = vsel %vm86, %v76, 0.0
    %v88 = vsel %vm86, %v77, 0.0
    %v89 = vadd.f32 %v87, %v88
    %90 = vadd.xlane.f32.xlu0 %v89
    %v91 = vpop.xlane.xlu0 %90
    %v92 = vsel %vm86, %v80, 0.0
    %v93 = vsel %vm86, %v81, 0.0
    %v94 = vadd.f32 %v92, %v93
    %95 = vadd.xlane.f32.xlu0 %v94
    %v96 = vpop.xlane.xlu0 %95
    %v99 = vlaneseq
    %v100 = vand.u32 %v99, 127
    %v101 = vperm.slane %v91, %v100
    %v102 = vperm.slane %v96, %v100
    %vm103 = vcmask 1041409
    %v104 = vsel %vm103, %v102, %v101
    %v106 = vadd.f32 %v70, %v104
    %vm107 = vcmask 25600
    %108 = vst.msk [vmem:[#allocation2] sm:$0x3] %vm107, %v106
    // Predicated region
    $region38: #{tpu_custom_call.1} parent=1 // pred_check
      %p109 = pneg %p64
    $region39: #{tpu_custom_call.1} parent=1 // pred_check_branch
      %111 = sbr.rel (%p109) target = $region41
    $region40: #{tpu_custom_call.1} parent=1 // pred_region
      %v112 = vld [vmem:[#allocation2] sm:$0x3]
      %v113 = vmul.f32 %v112, 0.00390625
      %v114 = vld [vmem:[#allocation6] sm:$0xf]
      %v115 = vld [vmem:[%s2] sm:$0x1]
      %v117 = vperm.slane %v115, 0
      %vm119 = vcmask 31744
      %v121 = vsel %vm119, %v113, 0
      %v124 = vsel %vm86, %v114, 0
      %126 = vmatpush.msra.mxu0 0.0
      %127 = vmatpush.msra.mxu0 0.0
      %128 = vmatpush.msra.mxu0 0.0
      %129 = vmatpush.msra.mxu0 0.0
      %130 = vmatpush.msra.mxu0 0.0
      %131 = vmatpush.msra.mxu0 0.0
      %132 = vmatpush.msra.mxu0 0.0
      %133 = vmatpush.msra.mxu0 0.0
      %134 = vmatpush.msra.mxu0 0.0
      %135 = vmatpush.msra.mxu0 0.0
      %136 = vmatpush.msra.mxu0 0.0
      %137 = vmatpush.msra.mxu0 0.0
      %138 = vmatpush.msra.mxu0 0.0
      %139 = vmatpush.msra.mxu0 0.0
      %140 = vmatpush.msra.mxu0 0.0
      %141 = vmatpush.msra.mxu0 %v124
      %142 = vmatmul.f32.gmra.mxu0 %v121
      %v143 = vpop.f32.mrf.mxu0
      %v144 = vadd.f32 %v117, %v143
      %145 = vdwg.mxu0
      %v146 = vmax.f32 %v144, 0.0
      %v147 = vld [vmem:[#allocation8] sm:$0x7]
      %v148 = vld [vmem:[%s4] sm:$0x1]
      %v150 = vperm.slane %v148, 0
      %vm152 = vcmask 23552
      %v154 = vsel %vm152, %v146, 0
      %vm156 = vcmask 1042432
      %v158 = vsel %vm156, %v147, 0
      %160 = vmatpush.msra.mxu0 0.0
      %161 = vmatpush.msra.mxu0 0.0
      %162 = vmatpush.msra.mxu0 0.0
      %163 = vmatpush.msra.mxu0 0.0
      %164 = vmatpush.msra.mxu0 0.0
      %165 = vmatpush.msra.mxu0 0.0
      %166 = vmatpush.msra.mxu0 0.0
      %167 = vmatpush.msra.mxu0 0.0
      %168 = vmatpush.msra.mxu0 0.0
      %169 = vmatpush.msra.mxu0 0.0
      %170 = vmatpush.msra.mxu0 0.0
      %171 = vmatpush.msra.mxu0 0.0
      %172 = vmatpush.msra.mxu0 0.0
      %173 = vmatpush.msra.mxu0 0.0
      %174 = vmatpush.msra.mxu0 0.0
      %175 = vmatpush.msra.mxu0 %v158
      %176 = vmatmul.f32.gmra.mxu0 %v154
      %v177 = vpop.f32.mrf.mxu0
      %v178 = vadd.f32 %v150, %v177
      %179 = vdwg.mxu0
      %vm180 = vcmask 17408
      %v181 = vsel %vm180, %v178, -inf
      %182 = vmax.xlane.f32.xlu0 %v181
      %v183 = vpop.xlane.xlu0 %182
      %v184 = vsub.f32 %v178, %v183
      %v185 = vmul.f32 %v184, 1.442695
      %v186 = vpow.pop %v185
      %v187 = vsel %vm180, %v186, 0.0
      %188 = vadd.xlane.f32.xlu0 %v187
      %v189 = vpop.xlane.xlu0 %188
      %v190 = vrcp.pop %v189
      %v191 = vmul.f32 %v189, %v190
      %v192 = vsub.f32 1.0, %v191
      %v193 = vmul.f32 %v190, %v192
      %v194 = vadd.f32 %v190, %v193
      %vm195 = vweird.f32 %v189
      %vm196 = vweird.f32 %v190
      %vm197 = vmor %vm195, %vm196
      %v198 = vsel %vm197, %v190, %v194
      %v199 = vand.u32 2147483647, %v189
      %vm200 = vcmp.eq.f32.partialorder %v199, 8.507059e+37
      %v201 = vand.u32 %v189, 2147483648
      %v202 = vor.u32 1.1754944e-38, %v201
      %v203 = vsel %vm200, %v202, %v198
      %v204 = vmul.f32 %v186, %v203
      %205 = vst.msk [vmem:[#allocation9] sm:$0x3] %vm180, %v204
    $region41: #{tpu_custom_call.1} parent=1 // pred_fallthru
      _
    // Predicated region
    $region42: #{tpu_custom_call.1} parent=1 // pred_check
      _
    $region43: #{tpu_custom_call.1} parent=1 // pred_check_branch
      %207 = sbr.rel (0) target = $region45
    $region44: #{tpu_custom_call.1} parent=1 // pred_region
      %209 = vsyncadd [#allocation5], 0
      %s211 = sshll.u32 [#allocation9], 4
      %s212 = int_to_ptr.vmem [resolvable:$true] %s211
      %s213 = sshll.u32 %s5, 4
      %s214 = int_to_ptr.hbm [resolvable:$true] %s213
      %216 = dma.vmem_to_hbm [thread:$0]  %s212, 32, %s214, [#allocation5]
    $region45: #{tpu_custom_call.1} parent=1 // pred_fallthru
      _
    // Predicated region
    $region46: #{tpu_custom_call.1} parent=1 // pred_check
      _
    $region47: #{tpu_custom_call.1} parent=1 // pred_check_branch
      %218 = sbr.rel (0) target = $region49
    $region48: #{tpu_custom_call.1} parent=1 // pred_region
      %220 = dma.done [#allocation5], 32
    $region49: #{tpu_custom_call.1} parent=1 // pred_fallthru
      _
    %221 = vsyncpa [#allocation4], 1
    %222 = vsyncpa [#allocation7], 1
    %223 = vsyncpa [#allocation5], 1

</llo_original>
